<compile_context>
chip_gen: v5e
topology: v5e:2x2
jax: 0.10.0
libtpu: 0.0.40
codegen_flags: <defaults>
</compile_context>

<pallas_src>
import functools

import jax
import jax.numpy as jnp
from jax.experimental import pallas as pl
from jax.experimental.pallas import tpu as pltpu


def _basic_block_kernel(x_ref, w1_ref, b1_ref, w2_ref, b2_ref, o_ref, pad_ref,
                        *, H):
    """Fused conv3x3 -> bn -> relu -> conv3x3 -> bn -> (+id) -> relu.

    x_ref  : (1, H, W*C)  bf16, lane-dense activation slab (one batch element)
    w*_ref : (3, W*C, W*C) bf16 band matrices (kw taps + channels + BN scale
             folded in; one matrix per kh tap)
    b*_ref : (1, W*C) f32  folded BN bias, tiled per-W position
    o_ref  : (1, H, W*C) f32
    pad_ref: VMEM scratch (H+2, W*C) f32, rows 0 and H+1 are the zero H-halo
    """
    lanes = x_ref.shape[-1]

    # Keep the two H-halo rows zero ('SAME' padding along H). Cheap (2 row
    # stores) and megacore-safe, unlike a one-time @pl.when(program_id==0) fill.
    zrow = jnp.zeros((1, lanes), jnp.float32)
    pad_ref[0:1, :] = zrow
    pad_ref[H + 1:H + 2, :] = zrow

    x = x_ref[0]                                    # (H, W*C) bf16, lane-dense

    def conv3x3_band(w_ref):
        # H-direction taps = 3 sublane-offset row slices of the padded scratch.
        # W-direction taps + channel contraction (+ W-edge zero padding) are
        # pre-folded into each (W*C, W*C) band matrix -> 3 lane-dense bf16 MXU
        # matmuls with f32 accumulation; no per-tap reshape/relayout copies.
        acc = jnp.dot(pad_ref[0:H, :].astype(jnp.bfloat16), w_ref[0],
                      preferred_element_type=jnp.float32)
        acc += jnp.dot(pad_ref[1:H + 1, :].astype(jnp.bfloat16), w_ref[1],
                       preferred_element_type=jnp.float32)
        acc += jnp.dot(pad_ref[2:H + 2, :].astype(jnp.bfloat16), w_ref[2],
                       preferred_element_type=jnp.float32)
        return acc

    # conv1 (bn1 scale folded into w1) -> +bias -> relu
    pad_ref[1:H + 1, :] = x.astype(jnp.float32)
    out1 = jnp.maximum(conv3x3_band(w1_ref) + b1_ref[...], 0.0)

    # conv2 (bn2 scale folded into w2) -> +bias -> identity shortcut -> relu
    pad_ref[1:H + 1, :] = out1                      # interior only; halo stays 0
    out2 = conv3x3_band(w2_ref) + b2_ref[...]
    o_ref[0] = jnp.maximum(out2 + x.astype(jnp.float32), 0.0).astype(o_ref.dtype)


def _band_weights(w_hwio, scale, width):
    """Glue: fold BN scale into w and build, per kh tap, a (W*Cin, W*Cout) band
    matrix that folds the kw taps + channel contraction + W-edge zero padding
    into a single lane-dense matmul:
        M_kh[(w+kw-1)*Cin + ci, w*Cout + co] = w[kh, kw, ci, co] * scale[co]
    """
    kh, kw, cin, cout = w_hwio.shape
    w = w_hwio.astype(jnp.float32) * scale.astype(jnp.float32)[None, None, None, :]
    mats = []
    for h in range(kh):
        m = jnp.zeros((width * cin, width * cout), jnp.float32)
        for k in range(kw):
            shift = jnp.eye(width, k=1 - k, dtype=jnp.float32)  # in col w+k-1 -> out col w
            m = m + jnp.kron(shift, w[h, k])
        mats.append(m)
    return jnp.stack(mats)                           # (3, W*Cin, W*Cout)


def basic_block(x_nhwc, w1, g1, be1, m1, v1, w2, g2, be2, m2, v2, eps=1e-5):
    """x_nhwc: (N, H, W, C) float32; w1/w2: HWIO (3, 3, C, C)."""
    N, H, W, C = x_nhwc.shape
    Cout = w1.shape[-1]
    assert C == Cout, "stride=1 BasicBlock requires in_planes == out_planes"
    lanes = W * C
    assert lanes % 128 == 0, "lane-dense layout here requires W*C % 128 == 0"

    # Fold BatchNorm (eval mode): scale goes into the conv weights, bias stays.
    s1 = g1 / jnp.sqrt(v1 + eps)
    b1 = be1 - m1 * s1
    s2 = g2 / jnp.sqrt(v2 + eps)
    b2 = be2 - m2 * s2

    w1_bd = _band_weights(w1, s1, W).astype(jnp.bfloat16)   # (3, 128, 128)
    w2_bd = _band_weights(w2, s2, W).astype(jnp.bfloat16)
    b1_l = jnp.tile(b1.astype(jnp.float32), W).reshape(1, lanes)
    b2_l = jnp.tile(b2.astype(jnp.float32), W).reshape(1, lanes)

    # Lane-dense activation slab; bf16 halves DMA bytes (matmul operands bf16,
    # accumulation + elementwise stay f32 inside the kernel).
    x_flat = x_nhwc.reshape(N, H, lanes).astype(jnp.bfloat16)

    kernel = functools.partial(_basic_block_kernel, H=H)

    out = pl.pallas_call(
        kernel,
        out_shape=jax.ShapeDtypeStruct((N, H, lanes), jnp.float32),
        grid_spec=pltpu.PrefetchScalarGridSpec(
            num_scalar_prefetch=0,
            grid=(N,),
            in_specs=[
                pl.BlockSpec((1, H, lanes), lambda n: (n, 0, 0)),
                pl.BlockSpec((3, lanes, lanes), lambda n: (0, 0, 0)),
                pl.BlockSpec((1, lanes), lambda n: (0, 0)),
                pl.BlockSpec((3, lanes, lanes), lambda n: (0, 0, 0)),
                pl.BlockSpec((1, lanes), lambda n: (0, 0)),
            ],
            out_specs=pl.BlockSpec((1, H, lanes), lambda n: (n, 0, 0)),
            scratch_shapes=[pltpu.VMEM((H + 2, lanes), jnp.float32)],
        ),
        compiler_params=pltpu.CompilerParams(
            dimension_semantics=("parallel",)),
    )(x_flat, w1_bd, b1_l, w2_bd, b2_l)

    return out.reshape(N, H, W, C)


def _reference(x_nhwc, w1, g1, be1, m1, v1, w2, g2, be2, m2, v2, eps=1e-5):
    """Pure-JAX f32 reference (NHWC conv + eval-mode BN)."""
    dn = ("NHWC", "HWIO", "NHWC")

    def conv(x, w):
        return jax.lax.conv_general_dilated(x, w, (1, 1), "SAME",
                                            dimension_numbers=dn)

    def bn(x, g, b, m, v):
        return (x - m) / jnp.sqrt(v + eps) * g + b

    out = jax.nn.relu(bn(conv(x_nhwc, w1), g1, be1, m1, v1))
    out = bn(conv(out, w2), g2, be2, m2, v2)
    return jax.nn.relu(out + x_nhwc)


if __name__ == "__main__":
    # Small shapes: batch=2, channels=8, spatial=16x16 so W*C = 128 (lane-dense).
    N, C, Hs, Ws = 2, 8, 16, 16
    key = jax.random.PRNGKey(0)
    ks = jax.random.split(key, 8)

    # PyTorch-native layouts (NCHW input, OIHW weights), deterministic init.
    x_nchw = jax.random.normal(ks[0], (N, C, Hs, Ws), jnp.float32)
    w1_oihw = jax.random.normal(ks[1], (C, C, 3, 3), jnp.float32) * 0.1
    w2_oihw = jax.random.normal(ks[2], (C, C, 3, 3), jnp.float32) * 0.1
    g1 = 1.0 + 0.1 * jax.random.normal(ks[3], (C,), jnp.float32)
    be1 = 0.1 * jax.random.normal(ks[4], (C,), jnp.float32)
    g2 = 1.0 + 0.1 * jax.random.normal(ks[5], (C,), jnp.float32)
    be2 = 0.1 * jax.random.normal(ks[6], (C,), jnp.float32)
    m1 = 0.05 * jax.random.normal(ks[7], (C,), jnp.float32)
    v1 = jnp.ones((C,), jnp.float32) * 1.2
    m2 = jnp.zeros((C,), jnp.float32)
    v2 = jnp.ones((C,), jnp.float32) * 0.9

    # Convert layouts: NCHW -> NHWC, OIHW -> HWIO (glue).
    x_nhwc = jnp.transpose(x_nchw, (0, 2, 3, 1))
    w1 = jnp.transpose(w1_oihw, (2, 3, 1, 0))
    w2 = jnp.transpose(w2_oihw, (2, 3, 1, 0))

    out = basic_block(x_nhwc, w1, g1, be1, m1, v1, w2, g2, be2, m2, v2)
    out = jax.block_until_ready(out)

    ref = _reference(x_nhwc, w1, g1, be1, m1, v1, w2, g2, be2, m2, v2)
    assert out.shape == (N, Hs, Ws, C)
    # Tolerance reflects bf16 MXU operands (f32 accumulation) vs. the f32
    # reference; observed error is O(1e-2) absolute on O(1) outputs.
    assert jnp.allclose(out, ref, rtol=3e-2, atol=3e-2), "mismatch vs reference"

    print("KERNEL_OK")
</pallas_src>

<mosaic_0001>
module attributes {stable_mosaic.version = 11 : i64} {
  func.func @_basic_block_kernel(%arg0: i32, %arg1: memref<1x16x128xbf16, #tpu.memory_space<vmem>>, %arg2: memref<3x128x128xbf16, #tpu.memory_space<vmem>>, %arg3: memref<1x128xf32, #tpu.memory_space<vmem>>, %arg4: memref<3x128x128xbf16, #tpu.memory_space<vmem>>, %arg5: memref<1x128xf32, #tpu.memory_space<vmem>>, %arg6: memref<1x16x128xf32, #tpu.memory_space<vmem>>, %arg7: memref<18x128xf32, #tpu.memory_space<vmem>>) attributes {dimension_semantics = [#tpu.dimension_semantics<parallel>], iteration_bounds = array<i64: 2>, scalar_prefetch = 0 : i64, scratch_operands = 1 : i64, tpu.core_type = #tpu.core_type<tc>, window_params = [{transform_indices = @transform_0, window_bounds = array<i64: 1, 16, 128>}, {pipeline_mode = #tpu.pipeline_mode<synchronous>, transform_indices = @transform_1, window_bounds = array<i64: 3, 128, 128>}, {pipeline_mode = #tpu.pipeline_mode<synchronous>, transform_indices = @transform_2, window_bounds = array<i64: 1, 128>}, {pipeline_mode = #tpu.pipeline_mode<synchronous>, transform_indices = @transform_3, window_bounds = array<i64: 3, 128, 128>}, {pipeline_mode = #tpu.pipeline_mode<synchronous>, transform_indices = @transform_4, window_bounds = array<i64: 1, 128>}, {transform_indices = @transform_5, window_bounds = array<i64: 1, 16, 128>}]} {
    %cst = arith.constant 0.000000e+00 : f32
    %0 = vector.broadcast %cst : f32 to vector<1x128xf32>
    %c0 = arith.constant 0 : index
    %c0_0 = arith.constant 0 : index
    %1 = vector.load %arg7[%c0, %c0_0] : memref<18x128xf32, #tpu.memory_space<vmem>>, vector<1x128xf32>
    tpu.vector_store %arg7[%c0, %c0_0], %0 {strides = array<i32>} : memref<18x128xf32, #tpu.memory_space<vmem>>, vector<1x128xf32>,
    %c17 = arith.constant 17 : index
    %c0_1 = arith.constant 0 : index
    %2 = vector.load %arg7[%c17, %c0_1] : memref<18x128xf32, #tpu.memory_space<vmem>>, vector<1x128xf32>
    tpu.vector_store %arg7[%c17, %c0_1], %0 {strides = array<i32>} : memref<18x128xf32, #tpu.memory_space<vmem>>, vector<1x128xf32>,
    %c0_2 = arith.constant 0 : index
    %c0_3 = arith.constant 0 : index
    %c0_4 = arith.constant 0 : index
    %3 = vector.load %arg1[%c0_2, %c0_3, %c0_4] : memref<1x16x128xbf16, #tpu.memory_space<vmem>>, vector<1x16x128xbf16>
    %4 = vector.shape_cast %3 : vector<1x16x128xbf16> to vector<16x128xbf16>
    %5 = arith.extf %4 : vector<16x128xbf16> to vector<16x128xf32>
    %c1 = arith.constant 1 : index
    %c0_5 = arith.constant 0 : index
    %6 = vector.load %arg7[%c1, %c0_5] : memref<18x128xf32, #tpu.memory_space<vmem>>, vector<16x128xf32>
    tpu.vector_store %arg7[%c1, %c0_5], %5 {strides = array<i32>} : memref<18x128xf32, #tpu.memory_space<vmem>>, vector<16x128xf32>,
    %c0_6 = arith.constant 0 : index
    %c0_7 = arith.constant 0 : index
    %7 = vector.load %arg7[%c0_6, %c0_7] : memref<18x128xf32, #tpu.memory_space<vmem>>, vector<16x128xf32>
    %8 = arith.truncf %7 : vector<16x128xf32> to vector<16x128xbf16>
    %c0_8 = arith.constant 0 : index
    %c0_9 = arith.constant 0 : index
    %c0_10 = arith.constant 0 : index
    %9 = vector.load %arg2[%c0_8, %c0_9, %c0_10] : memref<3x128x128xbf16, #tpu.memory_space<vmem>>, vector<1x128x128xbf16>
    %10 = vector.shape_cast %9 : vector<1x128x128xbf16> to vector<128x128xbf16>
    %cst_11 = arith.constant dense<0.000000e+00> : vector<16x128xf32>
    %11 = tpu.matmul %8, %10, %cst_11 {dimension_numbers = #tpu.dot_dimension_numbers<[1], [0], [0], [1], [0, 0, 1, 1], [], []>} : vector<16x128xbf16>, vector<128x128xbf16>, vector<16x128xf32> -> vector<16x128xf32>
    %c1_12 = arith.constant 1 : index
    %c0_13 = arith.constant 0 : index
    %12 = vector.load %arg7[%c1_12, %c0_13] : memref<18x128xf32, #tpu.memory_space<vmem>>, vector<16x128xf32>
    %13 = arith.truncf %12 : vector<16x128xf32> to vector<16x128xbf16>
    %c1_14 = arith.constant 1 : index
    %c0_15 = arith.constant 0 : index
    %c0_16 = arith.constant 0 : index
    %14 = vector.load %arg2[%c1_14, %c0_15, %c0_16] : memref<3x128x128xbf16, #tpu.memory_space<vmem>>, vector<1x128x128xbf16>
    %15 = vector.shape_cast %14 : vector<1x128x128xbf16> to vector<128x128xbf16>
    %cst_17 = arith.constant dense<0.000000e+00> : vector<16x128xf32>
    %16 = tpu.matmul %13, %15, %cst_17 {dimension_numbers = #tpu.dot_dimension_numbers<[1], [0], [0], [1], [0, 0, 1, 1], [], []>} : vector<16x128xbf16>, vector<128x128xbf16>, vector<16x128xf32> -> vector<16x128xf32>
    %17 = arith.addf %11, %16 : vector<16x128xf32>
    %c2 = arith.constant 2 : index
    %c0_18 = arith.constant 0 : index
    %18 = vector.load %arg7[%c2, %c0_18] : memref<18x128xf32, #tpu.memory_space<vmem>>, vector<16x128xf32>
    %19 = arith.truncf %18 : vector<16x128xf32> to vector<16x128xbf16>
    %c2_19 = arith.constant 2 : index
    %c0_20 = arith.constant 0 : index
    %c0_21 = arith.constant 0 : index
    %20 = vector.load %arg2[%c2_19, %c0_20, %c0_21] : memref<3x128x128xbf16, #tpu.memory_space<vmem>>, vector<1x128x128xbf16>
    %21 = vector.shape_cast %20 : vector<1x128x128xbf16> to vector<128x128xbf16>
    %cst_22 = arith.constant dense<0.000000e+00> : vector<16x128xf32>
    %22 = tpu.matmul %19, %21, %cst_22 {dimension_numbers = #tpu.dot_dimension_numbers<[1], [0], [0], [1], [0, 0, 1, 1], [], []>} : vector<16x128xbf16>, vector<128x128xbf16>, vector<16x128xf32> -> vector<16x128xf32>
    %23 = arith.addf %17, %22 : vector<16x128xf32>
    %c0_23 = arith.constant 0 : index
    %c0_24 = arith.constant 0 : index
    %24 = vector.load %arg3[%c0_23, %c0_24] : memref<1x128xf32, #tpu.memory_space<vmem>>, vector<1x128xf32>
    %25 = vector.broadcast %24 : vector<1x128xf32> to vector<16x128xf32>
    %26 = arith.addf %23, %25 : vector<16x128xf32>
    %cst_25 = arith.constant 0.000000e+00 : f32
    %27 = vector.broadcast %cst_25 : f32 to vector<16x128xf32>
    %28 = arith.maximumf %26, %27 : vector<16x128xf32>
    %c1_26 = arith.constant 1 : index
    %c0_27 = arith.constant 0 : index
    %29 = vector.load %arg7[%c1_26, %c0_27] : memref<18x128xf32, #tpu.memory_space<vmem>>, vector<16x128xf32>
    tpu.vector_store %arg7[%c1_26, %c0_27], %28 {strides = array<i32>} : memref<18x128xf32, #tpu.memory_space<vmem>>, vector<16x128xf32>,
    %c0_28 = arith.constant 0 : index
    %c0_29 = arith.constant 0 : index
    %30 = vector.load %arg7[%c0_28, %c0_29] : memref<18x128xf32, #tpu.memory_space<vmem>>, vector<16x128xf32>
    %31 = arith.truncf %30 : vector<16x128xf32> to vector<16x128xbf16>
    %c0_30 = arith.constant 0 : index
    %c0_31 = arith.constant 0 : index
    %c0_32 = arith.constant 0 : index
    %32 = vector.load %arg4[%c0_30, %c0_31, %c0_32] : memref<3x128x128xbf16, #tpu.memory_space<vmem>>, vector<1x128x128xbf16>
    %33 = vector.shape_cast %32 : vector<1x128x128xbf16> to vector<128x128xbf16>
    %cst_33 = arith.constant dense<0.000000e+00> : vector<16x128xf32>
    %34 = tpu.matmul %31, %33, %cst_33 {dimension_numbers = #tpu.dot_dimension_numbers<[1], [0], [0], [1], [0, 0, 1, 1], [], []>} : vector<16x128xbf16>, vector<128x128xbf16>, vector<16x128xf32> -> vector<16x128xf32>
    %c1_34 = arith.constant 1 : index
    %c0_35 = arith.constant 0 : index
    %35 = vector.load %arg7[%c1_34, %c0_35] : memref<18x128xf32, #tpu.memory_space<vmem>>, vector<16x128xf32>
    %36 = arith.truncf %35 : vector<16x128xf32> to vector<16x128xbf16>
    %c1_36 = arith.constant 1 : index
    %c0_37 = arith.constant 0 : index
    %c0_38 = arith.constant 0 : index
    %37 = vector.load %arg4[%c1_36, %c0_37, %c0_38] : memref<3x128x128xbf16, #tpu.memory_space<vmem>>, vector<1x128x128xbf16>
    %38 = vector.shape_cast %37 : vector<1x128x128xbf16> to vector<128x128xbf16>
    %cst_39 = arith.constant dense<0.000000e+00> : vector<16x128xf32>
    %39 = tpu.matmul %36, %38, %cst_39 {dimension_numbers = #tpu.dot_dimension_numbers<[1], [0], [0], [1], [0, 0, 1, 1], [], []>} : vector<16x128xbf16>, vector<128x128xbf16>, vector<16x128xf32> -> vector<16x128xf32>
    %40 = arith.addf %34, %39 : vector<16x128xf32>
    %c2_40 = arith.constant 2 : index
    %c0_41 = arith.constant 0 : index
    %41 = vector.load %arg7[%c2_40, %c0_41] : memref<18x128xf32, #tpu.memory_space<vmem>>, vector<16x128xf32>
    %42 = arith.truncf %41 : vector<16x128xf32> to vector<16x128xbf16>
    %c2_42 = arith.constant 2 : index
    %c0_43 = arith.constant 0 : index
    %c0_44 = arith.constant 0 : index
    %43 = vector.load %arg4[%c2_42, %c0_43, %c0_44] : memref<3x128x128xbf16, #tpu.memory_space<vmem>>, vector<1x128x128xbf16>
    %44 = vector.shape_cast %43 : vector<1x128x128xbf16> to vector<128x128xbf16>
    %cst_45 = arith.constant dense<0.000000e+00> : vector<16x128xf32>
    %45 = tpu.matmul %42, %44, %cst_45 {dimension_numbers = #tpu.dot_dimension_numbers<[1], [0], [0], [1], [0, 0, 1, 1], [], []>} : vector<16x128xbf16>, vector<128x128xbf16>, vector<16x128xf32> -> vector<16x128xf32>
    %46 = arith.addf %40, %45 : vector<16x128xf32>
    %c0_46 = arith.constant 0 : index
    %c0_47 = arith.constant 0 : index
    %47 = vector.load %arg5[%c0_46, %c0_47] : memref<1x128xf32, #tpu.memory_space<vmem>>, vector<1x128xf32>
    %48 = vector.broadcast %47 : vector<1x128xf32> to vector<16x128xf32>
    %49 = arith.addf %46, %48 : vector<16x128xf32>
    %50 = arith.extf %4 : vector<16x128xbf16> to vector<16x128xf32>
    %51 = arith.addf %49, %50 : vector<16x128xf32>
    %cst_48 = arith.constant 0.000000e+00 : f32
    %52 = vector.broadcast %cst_48 : f32 to vector<16x128xf32>
    %53 = arith.maximumf %51, %52 : vector<16x128xf32>
    %c0_49 = arith.constant 0 : index
    %c0_50 = arith.constant 0 : index
    %c0_51 = arith.constant 0 : index
    %54 = vector.load %arg6[%c0_49, %c0_50, %c0_51] : memref<1x16x128xf32, #tpu.memory_space<vmem>>, vector<1x16x128xf32>
    %55 = vector.shape_cast %54 : vector<1x16x128xf32> to vector<16x128xf32>
    %56 = vector.shape_cast %53 : vector<16x128xf32> to vector<1x16x128xf32>
    tpu.vector_store %arg6[%c0_49, %c0_50, %c0_51], %56 {strides = array<i32>} : memref<1x16x128xf32, #tpu.memory_space<vmem>>, vector<1x16x128xf32>,
    return
  }
  func.func @transform_0(%arg0: i32) -> (i32, i32, i32) {
    %c0_i32 = arith.constant 0 : i32
    %c0_i32_0 = arith.constant 0 : i32
    %c0_i32_1 = arith.constant 0 : i32
    return %arg0, %c0_i32, %c0_i32_0 : i32, i32, i32
  }
  func.func @transform_1(%arg0: i32) -> (i32, i32, i32) {
    %c0_i32 = arith.constant 0 : i32
    %c0_i32_0 = arith.constant 0 : i32
    %c0_i32_1 = arith.constant 0 : i32
    %c0_i32_2 = arith.constant 0 : i32
    return %c0_i32, %c0_i32_0, %c0_i32_1 : i32, i32, i32
  }
  func.func @transform_2(%arg0: i32) -> (i32, i32) {
    %c0_i32 = arith.constant 0 : i32
    %c0_i32_0 = arith.constant 0 : i32
    %c0_i32_1 = arith.constant 0 : i32
    return %c0_i32, %c0_i32_0 : i32, i32
  }
  func.func @transform_3(%arg0: i32) -> (i32, i32, i32) {
    %c0_i32 = arith.constant 0 : i32
    %c0_i32_0 = arith.constant 0 : i32
    %c0_i32_1 = arith.constant 0 : i32
    %c0_i32_2 = arith.constant 0 : i32
    return %c0_i32, %c0_i32_0, %c0_i32_1 : i32, i32, i32
  }
  func.func @transform_4(%arg0: i32) -> (i32, i32) {
    %c0_i32 = arith.constant 0 : i32
    %c0_i32_0 = arith.constant 0 : i32
    %c0_i32_1 = arith.constant 0 : i32
    return %c0_i32, %c0_i32_0 : i32, i32
  }
  func.func @transform_5(%arg0: i32) -> (i32, i32, i32) {
    %c0_i32 = arith.constant 0 : i32
    %c0_i32_0 = arith.constant 0 : i32
    %c0_i32_1 = arith.constant 0 : i32
    return %arg0, %c0_i32, %c0_i32_0 : i32, i32, i32
  }
}

</mosaic_0001>

<llo_original>
// kernel: tpu_custom_call.1
$region0: #{tpu_custom_call.1}
  #allocation0 [shape = 'u32[]', space=smem, size = 0x4, offset = 0x4, fixed_abs, tag = 'smem constant byte address 0x4 - core index']
  #allocation1 [shape = 'u32[72,128]{1,0:T(1,128)}', space=vmem, size = 0x9000, scoped, tag = 'internal scratch']
  #allocation2 [shape = 'f32[18,128]{1,0:T(8,128)}', space=vmem, size = 0x3000, scoped, tag = 'scratch operand']
  %s0 = inlined_call_operand.hbm [shape: bf16[2,16,128], index: 0, kind: input, shape index: {}]
  %s1 = inlined_call_operand.hbm [shape: bf16[3,128,128], index: 1, kind: input, shape index: {}]
  %s2 = inlined_call_operand.vmem [shape: f32[1,128], index: 2, kind: input, shape index: {}]
  %s3 = inlined_call_operand.hbm [shape: bf16[3,128,128], index: 3, kind: input, shape index: {}]
  %s4 = inlined_call_operand.vmem [shape: f32[1,128], index: 4, kind: input, shape index: {}]
  %s5 = inlined_call_operand.hbm [shape: f32[2,16,128], index: 5, kind: output, shape index: {}]
  %s6 = sld [smem:[#allocation0]]
  $region65: #{tpu_custom_call.1} parent=0
    _
  %s8 = ssub.s32 1, %s6
  %s9 = scalar_select 0, %s8, %s6
  $region1: #{tpu_custom_call.1} parent=0
    #allocation3 [shape = 'u8[8192]{0}', space=vmem, size = 0x2000, scoped, tag = 'input window, operand 0']
    #allocation4 [shape = 's32[2]{0}', space=sflag, size = 0x8, scoped, tag = 'scoped memory for tpu_custom_call.1']
    #allocation5 [shape = 's32[2]{0}', space=sflag, size = 0x8, scoped, tag = 'scoped memory for tpu_custom_call.1']
    #allocation6 [shape = 'u8[98304]{0}', space=vmem, size = 0x18000, scoped, tag = 'input window, operand 1, single buffered']
    #allocation7 [shape = 's32[1]{0}', space=sflag, size = 0x4, scoped, tag = 'scoped memory for tpu_custom_call.1']
    #allocation8 [shape = 'u8[98304]{0}', space=vmem, size = 0x18000, scoped, tag = 'input window, operand 3, single buffered']
    #allocation9 [shape = 'u8[16384]{0}', space=vmem, size = 0x4000, scoped, tag = 'output window, operand 0']
    %10 = vsyncpa [#allocation4], 0
    %s11 = scalar_lea.sflag [#allocation4], 1
    %12 = vsyncpa %s11, 0
    %13 = vsyncpa [#allocation7], 0
    %14 = vsyncpa [#allocation5], 0
    %s15 = scalar_lea.sflag [#allocation5], 1
    %16 = vsyncpa %s15, 0
    loop: start=0, step=1, limit=4
    $region2: #{tpu_custom_call.1} parent=1 // loop_pre_header
      _
    $region3: #{tpu_custom_call.1} parent=1 // loop_header
      %s18 = sphi 0, %s22
      %p19 = scmp.ge.s32.totalorder %s18, 4
      %s28 = sphi 0, %s30
      %s31 = sphi 0, %s28
      %s32 = sphi 0, %s31
      %s48 = sphi 0, %s32
      %s52 = sphi 0, %s52
      %s54 = sphi 0, %s52
      %s55 = sphi 0, %s54
      %s69 = sphi 0, %s55
      %s73 = sphi 0, %s73
      %s75 = sphi 0, %s73
      %s76 = sphi 0, %s75
      %s90 = sphi 0, %s76
      %s94 = sphi 0, %s94
      %s96 = sphi 0, %s94
      %s97 = sphi 0, %s96
      %s111 = sphi 0, %s97
      %s115 = sphi 0, %s115
      %s117 = sphi 0, %s115
      %s118 = sphi 0, %s117
      %s132 = sphi 0, %s118
      %s138 = sphi 0, %s140
      %s141 = sphi 0, %s138
      %s142 = sphi 0, %s141
      %s158 = sphi 0, %s142
    $region4: #{tpu_custom_call.1} parent=1 // loop_header_branch
      %21 = sbr.rel (%p19) target = $region8
    $region5: #{tpu_custom_call.1} parent=1 // loop_body
      %s23 = ssub.s32 %s18, 1
      %s24 = ssub.s32 %s18, 2
      %s25 = sadd.s32 %s18, 1
      %s26 = ssub.s32 %s18, %s25
      %p27 = scmp.eq.s32.totalorder %s26, 0
      %s29 = sadd.s32 %s28, 1
      %s30 = scalar_select %p27, %s28, %s29
      %p33 = pneg %p27
      %p34 = scmp.eq.s32.totalorder %s18, 1
      %p35 = por %p33, %p34
      %p36 = scmp.ne.s32.totalorder %s28, %s31
      %p37 = scmp.eq.s32.totalorder %s18, 0
      %p38 = por %p36, %p37
      %p39 = scmp.ne.s32.totalorder %s28, %s31
      %p40 = scmp.eq.s32.totalorder %s23, 1
      %p41 = por %p39, %p40
      %p42 = scmp.ne.s32.totalorder %s31, %s32
      %p43 = scmp.eq.s32.totalorder %s23, 0
      %p44 = por %p42, %p43
      %p45 = scmp.ne.s32.totalorder %s31, %s32
      %p46 = scmp.eq.s32.totalorder %s24, 1
      %p47 = por %p45, %p46
      %p49 = scmp.ne.s32.totalorder %s32, %s48
      %p50 = scmp.eq.s32.totalorder %s24, 0
      %p51 = por %p49, %p50
      %s53 = sadd.s32 %s52, 1
      %p56 = scmp.eq.s32.totalorder %s18, 1
      %p57 = scmp.ne.s32.totalorder %s52, %s54
      %p58 = scmp.eq.s32.totalorder %s18, 0
      %p59 = por %p57, %p58
      %p60 = scmp.ne.s32.totalorder %s52, %s54
      %p61 = scmp.eq.s32.totalorder %s23, 1
      %p62 = por %p60, %p61
      %p63 = scmp.ne.s32.totalorder %s54, %s55
      %p64 = scmp.eq.s32.totalorder %s23, 0
      %p65 = por %p63, %p64
      %p66 = scmp.ne.s32.totalorder %s54, %s55
      %p67 = scmp.eq.s32.totalorder %s24, 1
      %p68 = por %p66, %p67
      %p70 = scmp.ne.s32.totalorder %s55, %s69
      %p71 = scmp.eq.s32.totalorder %s24, 0
      %p72 = por %p70, %p71
      %s74 = sadd.s32 %s73, 1
      %p77 = scmp.eq.s32.totalorder %s18, 1
      %p78 = scmp.ne.s32.totalorder %s73, %s75
      %p79 = scmp.eq.s32.totalorder %s18, 0
      %p80 = por %p78, %p79
      %p81 = scmp.ne.s32.totalorder %s73, %s75
      %p82 = scmp.eq.s32.totalorder %s23, 1
      %p83 = por %p81, %p82
      %p84 = scmp.ne.s32.totalorder %s75, %s76
      %p85 = scmp.eq.s32.totalorder %s23, 0
      %p86 = por %p84, %p85
      %p87 = scmp.ne.s32.totalorder %s75, %s76
      %p88 = scmp.eq.s32.totalorder %s24, 1
      %p89 = por %p87, %p88
      %p91 = scmp.ne.s32.totalorder %s76, %s90
      %p92 = scmp.eq.s32.totalorder %s24, 0
      %p93 = por %p91, %p92
      %s95 = sadd.s32 %s94, 1
      %p98 = scmp.eq.s32.totalorder %s18, 1
      %p99 = scmp.ne.s32.totalorder %s94, %s96
      %p100 = scmp.eq.s32.totalorder %s18, 0
      %p101 = por %p99, %p100
      %p102 = scmp.ne.s32.totalorder %s94, %s96
      %p103 = scmp.eq.s32.totalorder %s23, 1
      %p104 = por %p102, %p103
      %p105 = scmp.ne.s32.totalorder %s96, %s97
      %p106 = scmp.eq.s32.totalorder %s23, 0
      %p107 = por %p105, %p106
      %p108 = scmp.ne.s32.totalorder %s96, %s97
      %p109 = scmp.eq.s32.totalorder %s24, 1
      %p110 = por %p108, %p109
      %p112 = scmp.ne.s32.totalorder %s97, %s111
      %p113 = scmp.eq.s32.totalorder %s24, 0
      %p114 = por %p112, %p113
      %s116 = sadd.s32 %s115, 1
      %p119 = scmp.eq.s32.totalorder %s18, 1
      %p120 = scmp.ne.s32.totalorder %s115, %s117
      %p121 = scmp.eq.s32.totalorder %s18, 0
      %p122 = por %p120, %p121
      %p123 = scmp.ne.s32.totalorder %s115, %s117
      %p124 = scmp.eq.s32.totalorder %s23, 1
      %p125 = por %p123, %p124
      %p126 = scmp.ne.s32.totalorder %s117, %s118
      %p127 = scmp.eq.s32.totalorder %s23, 0
      %p128 = por %p126, %p127
      %p129 = scmp.ne.s32.totalorder %s117, %s118
      %p130 = scmp.eq.s32.totalorder %s24, 1
      %p131 = por %p129, %p130
      %p133 = scmp.ne.s32.totalorder %s118, %s132
      %p134 = scmp.eq.s32.totalorder %s24, 0
      %p135 = por %p133, %p134
      %s136 = ssub.s32 %s18, %s25
      %p137 = scmp.eq.s32.totalorder %s136, 0
      %s139 = sadd.s32 %s138, 1
      %s140 = scalar_select %p137, %s138, %s139
      %p143 = pneg %p137
      %p144 = scmp.eq.s32.totalorder %s18, 1
      %p145 = por %p143, %p144
      %p146 = scmp.ne.s32.totalorder %s138, %s141
      %p147 = scmp.eq.s32.totalorder %s18, 0
      %p148 = por %p146, %p147
      %p149 = scmp.ne.s32.totalorder %s138, %s141
      %p150 = scmp.eq.s32.totalorder %s23, 1
      %p151 = por %p149, %p150
      %p152 = scmp.ne.s32.totalorder %s141, %s142
      %p153 = scmp.eq.s32.totalorder %s23, 0
      %p154 = por %p152, %p153
      %p155 = scmp.ne.s32.totalorder %s141, %s142
      %p156 = scmp.eq.s32.totalorder %s24, 1
      %p157 = por %p155, %p156
      %p159 = scmp.ne.s32.totalorder %s142, %s158
      %p160 = scmp.eq.s32.totalorder %s24, 0
      %p161 = por %p159, %p160
      %p162 = scmp.le.s32.totalorder 1, %s18
      %p163 = scmp.lt.s32.totalorder %s18, 3
      %p164 = pnand %p162, %p163
      %p165 = pneg %p164
      // Predicated region
      $region9: #{tpu_custom_call.1} parent=5 // pred_check
        _
      $region10: #{tpu_custom_call.1} parent=5 // pred_check_branch
        %167 = sbr.rel (%p164) target = $region12
      $region11: #{tpu_custom_call.1} parent=5 // pred_region
        %s168 = ssub.s32 %s18, 1
        // Predicated region
        $region13: #{tpu_custom_call.1} parent=11 // pred_check
          %p169 = pneg %p65
        $region14: #{tpu_custom_call.1} parent=11 // pred_check_branch
          %171 = sbr.rel (%p169) target = $region16
        $region15: #{tpu_custom_call.1} parent=11 // pred_region
          %173 = vsyncadd [#allocation7], 0
          %s174 = sshll.u32 %s1, 4
          %s175 = int_to_ptr.hbm [resolvable:$true] %s174
          %s176 = sshll.u32 [#allocation6], 4
          %s177 = int_to_ptr.vmem [resolvable:$true] %s176
          %182 = dma.hbm_to_vmem [thread:$0]  %s175, 3072, %s177, [#allocation7], 64, 64, 4
        $region16: #{tpu_custom_call.1} parent=11 // pred_fallthru
          _
        // Predicated region
        $region17: #{tpu_custom_call.1} parent=11 // pred_check
          %p183 = pneg %p86
        $region18: #{tpu_custom_call.1} parent=11 // pred_check_branch
          %185 = sbr.rel (%p183) target = $region20
        $region19: #{tpu_custom_call.1} parent=11 // pred_region
          _
        $region20: #{tpu_custom_call.1} parent=11 // pred_fallthru
          _
        // Predicated region
        $region21: #{tpu_custom_call.1} parent=11 // pred_check
          %p186 = pneg %p107
        $region22: #{tpu_custom_call.1} parent=11 // pred_check_branch
          %188 = sbr.rel (%p186) target = $region24
        $region23: #{tpu_custom_call.1} parent=11 // pred_region
          %190 = vsyncadd [#allocation7], 0
          %s191 = sshll.u32 %s3, 4
          %s192 = int_to_ptr.hbm [resolvable:$true] %s191
          %s193 = sshll.u32 [#allocation8], 4
          %s194 = int_to_ptr.vmem [resolvable:$true] %s193
          %199 = dma.hbm_to_vmem [thread:$0]  %s192, 3072, %s194, [#allocation7], 64, 64, 4
        $region24: #{tpu_custom_call.1} parent=11 // pred_fallthru
          _
        // Predicated region
        $region25: #{tpu_custom_call.1} parent=11 // pred_check
          %p200 = pneg %p128
        $region26: #{tpu_custom_call.1} parent=11 // pred_check_branch
          %202 = sbr.rel (%p200) target = $region28
        $region27: #{tpu_custom_call.1} parent=11 // pred_region
          _
        $region28: #{tpu_custom_call.1} parent=11 // pred_fallthru
          _
      $region12: #{tpu_custom_call.1} parent=5 // pred_fallthru
        _
      %p203 = scmp.lt.s32.totalorder %s18, 2
      // Predicated region
      $region29: #{tpu_custom_call.1} parent=5 // pred_check
        %p204 = pneg %p203
      $region30: #{tpu_custom_call.1} parent=5 // pred_check_branch
        %206 = sbr.rel (%p204) target = $region32
      $region31: #{tpu_custom_call.1} parent=5 // pred_region
        // Predicated region
        $region33: #{tpu_custom_call.1} parent=31 // pred_check
          %p207 = pneg %p38
        $region34: #{tpu_custom_call.1} parent=31 // pred_check_branch
          %209 = sbr.rel (%p207) target = $region36
        $region35: #{tpu_custom_call.1} parent=31 // pred_region
          %s210 = sand.u32 %s28, 1
          %s211 = scalar_lea.sflag [#allocation4], %s210
          %s212 = sand.u32 %s28, 1
          %s213 = smul.addr %s212, 8
          %s214 = scalar_lea.vmem [#allocation3], %s213
          %216 = vsyncadd %s211, 0
          %s217 = smul.addr %s18, 2
          %s218 = smul.addr %s217, 4
          %s219 = scalar_lea.hbm %s0, %s218
          %s220 = sshll.u32 %s219, 4
          %s221 = int_to_ptr.hbm [resolvable:$true] %s220
          %s222 = sshll.u32 %s214, 4
          %s223 = int_to_ptr.vmem [resolvable:$true] %s222
          %228 = dma.hbm_to_vmem [thread:$0]  %s221, 128, %s223, %s211, 64, 64, 4
        $region36: #{tpu_custom_call.1} parent=31 // pred_fallthru
          _
      $region32: #{tpu_custom_call.1} parent=5 // pred_fallthru
        _
      %p229 = scmp.le.s32.totalorder 1, %s18
      %p230 = scmp.lt.s32.totalorder %s18, 3
      %p231 = pnand %p229, %p230
      %p232 = pneg %p231
      // Predicated region
      $region37: #{tpu_custom_call.1} parent=5 // pred_check
        _
      $region38: #{tpu_custom_call.1} parent=5 // pred_check_branch
        %234 = sbr.rel (%p231) target = $region40
      $region39: #{tpu_custom_call.1} parent=5 // pred_region
        %s235 = ssub.s32 %s18, 1
        %s236 = sand.u32 %s31, 1
        %s237 = scalar_lea.sflag [#allocation4], %s236
        %s238 = sand.u32 %s31, 1
        %s239 = smul.addr %s238, 8
        %s240 = scalar_lea.vmem [#allocation3], %s239
        // Predicated region
        $region41: #{tpu_custom_call.1} parent=39 // pred_check
          %p241 = pneg %p44
        $region42: #{tpu_custom_call.1} parent=39 // pred_check_branch
          %243 = sbr.rel (%p241) target = $region44
        $region43: #{tpu_custom_call.1} parent=39 // pred_region
          %245 = dma.done %s237, 128
        $region44: #{tpu_custom_call.1} parent=39 // pred_fallthru
          _
        // Predicated region
        $region45: #{tpu_custom_call.1} parent=39 // pred_check
          %p246 = pneg %p65
        $region46: #{tpu_custom_call.1} parent=39 // pred_check_branch
          %248 = sbr.rel (%p246) target = $region48
        $region47: #{tpu_custom_call.1} parent=39 // pred_region
          %250 = dma.done [#allocation7], 3072
        $region48: #{tpu_custom_call.1} parent=39 // pred_fallthru
          _
        // Predicated region
        $region49: #{tpu_custom_call.1} parent=39 // pred_check
          %p251 = pneg %p107
        $region50: #{tpu_custom_call.1} parent=39 // pred_check_branch
          %253 = sbr.rel (%p251) target = $region52
        $region51: #{tpu_custom_call.1} parent=39 // pred_region
          %255 = dma.done [#allocation7], 3072
        $region52: #{tpu_custom_call.1} parent=39 // pred_fallthru
          _
        %s256 = sand.u32 %s31, 1
        %s257 = scalar_lea.sflag [#allocation4], %s256
        %s258 = sand.u32 %s31, 1
        %s259 = smul.addr %s258, 8
        %s260 = scalar_lea.vmem [#allocation3], %s259
        %p261 = pneg %p44
        %p262 = pneg %p41
        %p263 = pneg %p65
        %p264 = pneg %p62
        %p265 = pneg %p86
        %p266 = pneg %p83
        %p267 = pneg %p107
        %p268 = pneg %p104
        %p269 = pneg %p128
        %p270 = pneg %p125
        %p271 = pneg %p154
        %p272 = pneg %p151
        %s273 = sand.u32 %s141, 1
        %s274 = scalar_lea.sflag [#allocation5], %s273
        %s275 = sand.u32 %s141, 1
        %s276 = smul.addr %s275, 16
        %s277 = scalar_lea.vmem [#allocation9], %s276
        %278 = vst [vmem:[#allocation2] sm:$0x1] 0.0
        %279 = vst [vmem:[#allocation2 + $0x11] sm:$0x1] 0.0
        %v280 = vld [vmem:[%s240] sm:$0xf]
        %v281 = vld [vmem:[%s240 + $0x4] sm:$0xf]
        %v282 = vunpack.c.l.bf16 %v280
        %v283 = vunpack.c.l.bf16 %v281
        %284 = vst [vmem:[#allocation2 + $0x1] sm:$0xff] %v282
        %285 = vst [vmem:[#allocation2 + $0x9] sm:$0xff] %v283
        %v286 = vld [vmem:[#allocation2] sm:$0xff]
        %v287 = vld [vmem:[#allocation2 + $0x8] sm:$0xff]
        %v288 = vpack.c.bf16 %v287, %v286
        %v289 = vld [vmem:[#allocation6] sm:$0xf]
        %v290 = vld [vmem:[#allocation6 + $0x4] sm:$0xf]
        %v291 = vld [vmem:[#allocation6 + $0x8] sm:$0xf]
        %v292 = vld [vmem:[#allocation6 + $0xc] sm:$0xf]
        %v293 = vld [vmem:[#allocation6 + $0x10] sm:$0xf]
        %v294 = vld [vmem:[#allocation6 + $0x14] sm:$0xf]
        %v295 = vld [vmem:[#allocation6 + $0x18] sm:$0xf]
        %v296 = vld [vmem:[#allocation6 + $0x1c] sm:$0xf]
        %v297 = vld [vmem:[#allocation6 + $0x20] sm:$0xf]
        %v298 = vld [vmem:[#allocation6 + $0x24] sm:$0xf]
        %v299 = vld [vmem:[#allocation6 + $0x28] sm:$0xf]
        %v300 = vld [vmem:[#allocation6 + $0x2c] sm:$0xf]
        %v301 = vld [vmem:[#allocation6 + $0x30] sm:$0xf]
        %v302 = vld [vmem:[#allocation6 + $0x34] sm:$0xf]
        %v303 = vld [vmem:[#allocation6 + $0x38] sm:$0xf]
        %v304 = vld [vmem:[#allocation6 + $0x3c] sm:$0xf]
        %v305 = vld [vmem:[#allocation2 + $0x1] sm:$0xff]
        %v306 = vld [vmem:[#allocation2 + $0x9] sm:$0xff]
        %v307 = vpack.c.bf16 %v306, %v305
        %s308 = scalar_lea.vmem [#allocation6], 64
        %v309 = vld [vmem:[%s308] sm:$0xf]
        %v310 = vld [vmem:[%s308 + $0x4] sm:$0xf]
        %v311 = vld [vmem:[%s308 + $0x8] sm:$0xf]
        %v312 = vld [vmem:[%s308 + $0xc] sm:$0xf]
        %v313 = vld [vmem:[%s308 + $0x10] sm:$0xf]
        %v314 = vld [vmem:[%s308 + $0x14] sm:$0xf]
        %v315 = vld [vmem:[%s308 + $0x18] sm:$0xf]
        %v316 = vld [vmem:[%s308 + $0x1c] sm:$0xf]
        %v317 = vld [vmem:[%s308 + $0x20] sm:$0xf]
        %v318 = vld [vmem:[%s308 + $0x24] sm:$0xf]
        %v319 = vld [vmem:[%s308 + $0x28] sm:$0xf]
        %v320 = vld [vmem:[%s308 + $0x2c] sm:$0xf]
        %v321 = vld [vmem:[%s308 + $0x30] sm:$0xf]
        %v322 = vld [vmem:[%s308 + $0x34] sm:$0xf]
        %v323 = vld [vmem:[%s308 + $0x38] sm:$0xf]
        %v324 = vld [vmem:[%s308 + $0x3c] sm:$0xf]
        %v341 = vunpack.c.l.b16 %v309
        %v342 = vunpack.c.l.b16 %v310
        %v343 = vunpack.c.l.b16 %v311
        %v344 = vunpack.c.l.b16 %v312
        %v345 = vunpack.c.l.b16 %v313
        %v346 = vunpack.c.l.b16 %v314
        %v347 = vunpack.c.l.b16 %v315
        %v348 = vunpack.c.l.b16 %v316
        %v349 = vunpack.c.l.b16 %v317
        %v350 = vunpack.c.l.b16 %v318
        %v351 = vunpack.c.l.b16 %v319
        %v352 = vunpack.c.l.b16 %v320
        %v353 = vunpack.c.l.b16 %v321
        %v354 = vunpack.c.l.b16 %v322
        %v355 = vunpack.c.l.b16 %v323
        %v356 = vunpack.c.l.b16 %v324
        %v357 = vpack.c.b16 %v342, %v341
        %v358 = vpack.c.b16 %v344, %v343
        %v359 = vpack.c.b16 %v346, %v345
        %v360 = vpack.c.b16 %v348, %v347
        %v361 = vpack.c.b16 %v350, %v349
        %v362 = vpack.c.b16 %v352, %v351
        %v363 = vpack.c.b16 %v354, %v353
        %v364 = vpack.c.b16 %v356, %v355
        %373 = vmatpush.bf16.msra.mxu0 %v364
        %374 = vmatpush.bf16.msra.mxu0 %v363
        %375 = vmatpush.bf16.msra.mxu0 %v362
        %376 = vmatpush.bf16.msra.mxu0 %v361
        %377 = vmatpush.bf16.msra.mxu0 %v360
        %378 = vmatpush.bf16.msra.mxu0 %v359
        %379 = vmatpush.bf16.msra.mxu0 %v358
        %380 = vmatpush.bf16.msra.mxu0 %v357
        %381 = vmatmul.bf16.gmra.mxu0 %v307
        %v382 = vpop.f32.mrf.mxu0
        %v383 = vadd.f32 0.0, %v382
        %v384 = vpop.f32.mrf.mxu0
        %v385 = vadd.f32 0.0, %v384
        %386 = vdwg.mxu0
        %v403 = vunpack.c.l.b16 %v289
        %v404 = vunpack.c.l.b16 %v290
        %v405 = vunpack.c.l.b16 %v291
        %v406 = vunpack.c.l.b16 %v292
        %v407 = vunpack.c.l.b16 %v293
        %v408 = vunpack.c.l.b16 %v294
        %v409 = vunpack.c.l.b16 %v295
        %v410 = vunpack.c.l.b16 %v296
        %v411 = vunpack.c.l.b16 %v297
        %v412 = vunpack.c.l.b16 %v298
        %v413 = vunpack.c.l.b16 %v299
        %v414 = vunpack.c.l.b16 %v300
        %v415 = vunpack.c.l.b16 %v301
        %v416 = vunpack.c.l.b16 %v302
        %v417 = vunpack.c.l.b16 %v303
        %v418 = vunpack.c.l.b16 %v304
        %v419 = vpack.c.b16 %v404, %v403
        %v420 = vpack.c.b16 %v406, %v405
        %v421 = vpack.c.b16 %v408, %v407
        %v422 = vpack.c.b16 %v410, %v409
        %v423 = vpack.c.b16 %v412, %v411
        %v424 = vpack.c.b16 %v414, %v413
        %v425 = vpack.c.b16 %v416, %v415
        %v426 = vpack.c.b16 %v418, %v417
        %435 = vmatpush.bf16.msra.mxu0 %v426
        %436 = vmatpush.bf16.msra.mxu0 %v425
        %437 = vmatpush.bf16.msra.mxu0 %v424
        %438 = vmatpush.bf16.msra.mxu0 %v423
        %439 = vmatpush.bf16.msra.mxu0 %v422
        %440 = vmatpush.bf16.msra.mxu0 %v421
        %441 = vmatpush.bf16.msra.mxu0 %v420
        %442 = vmatpush.bf16.msra.mxu0 %v419
        %443 = vmatmul.bf16.gmra.mxu0 %v288
        %v444 = vpop.f32.mrf.mxu0
        %v445 = vadd.f32 %v383, %v444
        %v446 = vpop.f32.mrf.mxu0
        %v447 = vadd.f32 %v385, %v446
        %448 = vdwg.mxu0
        %v449 = vld [vmem:[#allocation2 + $0x2] sm:$0xff]
        %v450 = vld [vmem:[#allocation2 + $0xa] sm:$0xff]
        %v451 = vpack.c.bf16 %v450, %v449
        %s452 = scalar_lea.vmem [#allocation6], 128
        %v453 = vld [vmem:[%s452] sm:$0xf]
        %v454 = vld [vmem:[%s452 + $0x4] sm:$0xf]
        %v455 = vld [vmem:[%s452 + $0x8] sm:$0xf]
        %v456 = vld [vmem:[%s452 + $0xc] sm:$0xf]
        %v457 = vld [vmem:[%s452 + $0x10] sm:$0xf]
        %v458 = vld [vmem:[%s452 + $0x14] sm:$0xf]
        %v459 = vld [vmem:[%s452 + $0x18] sm:$0xf]
        %v460 = vld [vmem:[%s452 + $0x1c] sm:$0xf]
        %v461 = vld [vmem:[%s452 + $0x20] sm:$0xf]
        %v462 = vld [vmem:[%s452 + $0x24] sm:$0xf]
        %v463 = vld [vmem:[%s452 + $0x28] sm:$0xf]
        %v464 = vld [vmem:[%s452 + $0x2c] sm:$0xf]
        %v465 = vld [vmem:[%s452 + $0x30] sm:$0xf]
        %v466 = vld [vmem:[%s452 + $0x34] sm:$0xf]
        %v467 = vld [vmem:[%s452 + $0x38] sm:$0xf]
        %v468 = vld [vmem:[%s452 + $0x3c] sm:$0xf]
        %v485 = vunpack.c.l.b16 %v453
        %v486 = vunpack.c.l.b16 %v454
        %v487 = vunpack.c.l.b16 %v455
        %v488 = vunpack.c.l.b16 %v456
        %v489 = vunpack.c.l.b16 %v457
        %v490 = vunpack.c.l.b16 %v458
        %v491 = vunpack.c.l.b16 %v459
        %v492 = vunpack.c.l.b16 %v460
        %v493 = vunpack.c.l.b16 %v461
        %v494 = vunpack.c.l.b16 %v462
        %v495 = vunpack.c.l.b16 %v463
        %v496 = vunpack.c.l.b16 %v464
        %v497 = vunpack.c.l.b16 %v465
        %v498 = vunpack.c.l.b16 %v466
        %v499 = vunpack.c.l.b16 %v467
        %v500 = vunpack.c.l.b16 %v468
        %v501 = vpack.c.b16 %v486, %v485
        %v502 = vpack.c.b16 %v488, %v487
        %v503 = vpack.c.b16 %v490, %v489
        %v504 = vpack.c.b16 %v492, %v491
        %v505 = vpack.c.b16 %v494, %v493
        %v506 = vpack.c.b16 %v496, %v495
        %v507 = vpack.c.b16 %v498, %v497
        %v508 = vpack.c.b16 %v500, %v499
        %517 = vmatpush.bf16.msra.mxu0 %v508
        %518 = vmatpush.bf16.msra.mxu0 %v507
        %519 = vmatpush.bf16.msra.mxu0 %v506
        %520 = vmatpush.bf16.msra.mxu0 %v505
        %521 = vmatpush.bf16.msra.mxu0 %v504
        %522 = vmatpush.bf16.msra.mxu0 %v503
        %523 = vmatpush.bf16.msra.mxu0 %v502
        %524 = vmatpush.bf16.msra.mxu0 %v501
        %525 = vmatmul.bf16.gmra.mxu0 %v451
        %v526 = vpop.f32.mrf.mxu0
        %v527 = vadd.f32 0.0, %v526
        %v528 = vpop.f32.mrf.mxu0
        %v529 = vadd.f32 0.0, %v528
        %530 = vdwg.mxu0
        %v531 = vadd.f32 %v445, %v527
        %v532 = vadd.f32 %v447, %v529
        %v533 = vld [vmem:[%s2] sm:$0x1]
        %v535 = vperm.slane %v533, 0
        %v537 = vadd.f32 %v531, %v535
        %v538 = vadd.f32 %v532, %v535
        %v539 = vmax.f32 %v537, 0.0
        %v540 = vmax.f32 %v538, 0.0
        %541 = vst [vmem:[#allocation2 + $0x1] sm:$0xff] %v539
        %542 = vst [vmem:[#allocation2 + $0x9] sm:$0xff] %v540
        %v543 = vld [vmem:[#allocation2] sm:$0xff]
        %v544 = vld [vmem:[#allocation2 + $0x8] sm:$0xff]
        %v545 = vpack.c.bf16 %v544, %v543
        %v546 = vld [vmem:[#allocation8] sm:$0xf]
        %v547 = vld [vmem:[#allocation8 + $0x4] sm:$0xf]
        %v548 = vld [vmem:[#allocation8 + $0x8] sm:$0xf]
        %v549 = vld [vmem:[#allocation8 + $0xc] sm:$0xf]
        %v550 = vld [vmem:[#allocation8 + $0x10] sm:$0xf]
        %v551 = vld [vmem:[#allocation8 + $0x14] sm:$0xf]
        %v552 = vld [vmem:[#allocation8 + $0x18] sm:$0xf]
        %v553 = vld [vmem:[#allocation8 + $0x1c] sm:$0xf]
        %v554 = vld [vmem:[#allocation8 + $0x20] sm:$0xf]
        %v555 = vld [vmem:[#allocation8 + $0x24] sm:$0xf]
        %v556 = vld [vmem:[#allocation8 + $0x28] sm:$0xf]
        %v557 = vld [vmem:[#allocation8 + $0x2c] sm:$0xf]
        %v558 = vld [vmem:[#allocation8 + $0x30] sm:$0xf]
        %v559 = vld [vmem:[#allocation8 + $0x34] sm:$0xf]
        %v560 = vld [vmem:[#allocation8 + $0x38] sm:$0xf]
        %v561 = vld [vmem:[#allocation8 + $0x3c] sm:$0xf]
        %v562 = vld [vmem:[#allocation2 + $0x1] sm:$0xff]
        %v563 = vld [vmem:[#allocation2 + $0x9] sm:$0xff]
        %v564 = vpack.c.bf16 %v563, %v562
        %s565 = scalar_lea.vmem [#allocation8], 64
        %v566 = vld [vmem:[%s565] sm:$0xf]
        %v567 = vld [vmem:[%s565 + $0x4] sm:$0xf]
        %v568 = vld [vmem:[%s565 + $0x8] sm:$0xf]
        %v569 = vld [vmem:[%s565 + $0xc] sm:$0xf]
        %v570 = vld [vmem:[%s565 + $0x10] sm:$0xf]
        %v571 = vld [vmem:[%s565 + $0x14] sm:$0xf]
        %v572 = vld [vmem:[%s565 + $0x18] sm:$0xf]
        %v573 = vld [vmem:[%s565 + $0x1c] sm:$0xf]
        %v574 = vld [vmem:[%s565 + $0x20] sm:$0xf]
        %v575 = vld [vmem:[%s565 + $0x24] sm:$0xf]
        %v576 = vld [vmem:[%s565 + $0x28] sm:$0xf]
        %v577 = vld [vmem:[%s565 + $0x2c] sm:$0xf]
        %v578 = vld [vmem:[%s565 + $0x30] sm:$0xf]
        %v579 = vld [vmem:[%s565 + $0x34] sm:$0xf]
        %v580 = vld [vmem:[%s565 + $0x38] sm:$0xf]
        %v581 = vld [vmem:[%s565 + $0x3c] sm:$0xf]
        %v598 = vunpack.c.l.b16 %v566
        %v599 = vunpack.c.l.b16 %v567
        %v600 = vunpack.c.l.b16 %v568
        %v601 = vunpack.c.l.b16 %v569
        %v602 = vunpack.c.l.b16 %v570
        %v603 = vunpack.c.l.b16 %v571
        %v604 = vunpack.c.l.b16 %v572
        %v605 = vunpack.c.l.b16 %v573
        %v606 = vunpack.c.l.b16 %v574
        %v607 = vunpack.c.l.b16 %v575
        %v608 = vunpack.c.l.b16 %v576
        %v609 = vunpack.c.l.b16 %v577
        %v610 = vunpack.c.l.b16 %v578
        %v611 = vunpack.c.l.b16 %v579
        %v612 = vunpack.c.l.b16 %v580
        %v613 = vunpack.c.l.b16 %v581
        %v614 = vpack.c.b16 %v599, %v598
        %v615 = vpack.c.b16 %v601, %v600
        %v616 = vpack.c.b16 %v603, %v602
        %v617 = vpack.c.b16 %v605, %v604
        %v618 = vpack.c.b16 %v607, %v606
        %v619 = vpack.c.b16 %v609, %v608
        %v620 = vpack.c.b16 %v611, %v610
        %v621 = vpack.c.b16 %v613, %v612
        %630 = vmatpush.bf16.msra.mxu0 %v621
        %631 = vmatpush.bf16.msra.mxu0 %v620
        %632 = vmatpush.bf16.msra.mxu0 %v619
        %633 = vmatpush.bf16.msra.mxu0 %v618
        %634 = vmatpush.bf16.msra.mxu0 %v617
        %635 = vmatpush.bf16.msra.mxu0 %v616
        %636 = vmatpush.bf16.msra.mxu0 %v615
        %637 = vmatpush.bf16.msra.mxu0 %v614
        %638 = vmatmul.bf16.gmra.mxu0 %v564
        %v639 = vpop.f32.mrf.mxu0
        %v640 = vadd.f32 0.0, %v639
        %v641 = vpop.f32.mrf.mxu0
        %v642 = vadd.f32 0.0, %v641
        %643 = vdwg.mxu0
        %v660 = vunpack.c.l.b16 %v546
        %v661 = vunpack.c.l.b16 %v547
        %v662 = vunpack.c.l.b16 %v548
        %v663 = vunpack.c.l.b16 %v549
        %v664 = vunpack.c.l.b16 %v550
        %v665 = vunpack.c.l.b16 %v551
        %v666 = vunpack.c.l.b16 %v552
        %v667 = vunpack.c.l.b16 %v553
        %v668 = vunpack.c.l.b16 %v554
        %v669 = vunpack.c.l.b16 %v555
        %v670 = vunpack.c.l.b16 %v556
        %v671 = vunpack.c.l.b16 %v557
        %v672 = vunpack.c.l.b16 %v558
        %v673 = vunpack.c.l.b16 %v559
        %v674 = vunpack.c.l.b16 %v560
        %v675 = vunpack.c.l.b16 %v561
        %v676 = vpack.c.b16 %v661, %v660
        %v677 = vpack.c.b16 %v663, %v662
        %v678 = vpack.c.b16 %v665, %v664
        %v679 = vpack.c.b16 %v667, %v666
        %v680 = vpack.c.b16 %v669, %v668
        %v681 = vpack.c.b16 %v671, %v670
        %v682 = vpack.c.b16 %v673, %v672
        %v683 = vpack.c.b16 %v675, %v674
        %692 = vmatpush.bf16.msra.mxu0 %v683
        %693 = vmatpush.bf16.msra.mxu0 %v682
        %694 = vmatpush.bf16.msra.mxu0 %v681
        %695 = vmatpush.bf16.msra.mxu0 %v680
        %696 = vmatpush.bf16.msra.mxu0 %v679
        %697 = vmatpush.bf16.msra.mxu0 %v678
        %698 = vmatpush.bf16.msra.mxu0 %v677
        %699 = vmatpush.bf16.msra.mxu0 %v676
        %700 = vmatmul.bf16.gmra.mxu0 %v545
        %v701 = vpop.f32.mrf.mxu0
        %v702 = vadd.f32 %v640, %v701
        %v703 = vpop.f32.mrf.mxu0
        %v704 = vadd.f32 %v642, %v703
        %705 = vdwg.mxu0
        %v706 = vld [vmem:[#allocation2 + $0x2] sm:$0xff]
        %v707 = vld [vmem:[#allocation2 + $0xa] sm:$0xff]
        %v708 = vpack.c.bf16 %v707, %v706
        %s709 = scalar_lea.vmem [#allocation8], 128
        %v710 = vld [vmem:[%s709] sm:$0xf]
        %v711 = vld [vmem:[%s709 + $0x4] sm:$0xf]
        %v712 = vld [vmem:[%s709 + $0x8] sm:$0xf]
        %v713 = vld [vmem:[%s709 + $0xc] sm:$0xf]
        %v714 = vld [vmem:[%s709 + $0x10] sm:$0xf]
        %v715 = vld [vmem:[%s709 + $0x14] sm:$0xf]
        %v716 = vld [vmem:[%s709 + $0x18] sm:$0xf]
        %v717 = vld [vmem:[%s709 + $0x1c] sm:$0xf]
        %v718 = vld [vmem:[%s709 + $0x20] sm:$0xf]
        %v719 = vld [vmem:[%s709 + $0x24] sm:$0xf]
        %v720 = vld [vmem:[%s709 + $0x28] sm:$0xf]
        %v721 = vld [vmem:[%s709 + $0x2c] sm:$0xf]
        %v722 = vld [vmem:[%s709 + $0x30] sm:$0xf]
        %v723 = vld [vmem:[%s709 + $0x34] sm:$0xf]
        %v724 = vld [vmem:[%s709 + $0x38] sm:$0xf]
        %v725 = vld [vmem:[%s709 + $0x3c] sm:$0xf]
        %v742 = vunpack.c.l.b16 %v710
        %v743 = vunpack.c.l.b16 %v711
        %v744 = vunpack.c.l.b16 %v712
        %v745 = vunpack.c.l.b16 %v713
        %v746 = vunpack.c.l.b16 %v714
        %v747 = vunpack.c.l.b16 %v715
        %v748 = vunpack.c.l.b16 %v716
        %v749 = vunpack.c.l.b16 %v717
        %v750 = vunpack.c.l.b16 %v718
        %v751 = vunpack.c.l.b16 %v719
        %v752 = vunpack.c.l.b16 %v720
        %v753 = vunpack.c.l.b16 %v721
        %v754 = vunpack.c.l.b16 %v722
        %v755 = vunpack.c.l.b16 %v723
        %v756 = vunpack.c.l.b16 %v724
        %v757 = vunpack.c.l.b16 %v725
        %v758 = vpack.c.b16 %v743, %v742
        %v759 = vpack.c.b16 %v745, %v744
        %v760 = vpack.c.b16 %v747, %v746
        %v761 = vpack.c.b16 %v749, %v748
        %v762 = vpack.c.b16 %v751, %v750
        %v763 = vpack.c.b16 %v753, %v752
        %v764 = vpack.c.b16 %v755, %v754
        %v765 = vpack.c.b16 %v757, %v756
        %774 = vmatpush.bf16.msra.mxu0 %v765
        %775 = vmatpush.bf16.msra.mxu0 %v764
        %776 = vmatpush.bf16.msra.mxu0 %v763
        %777 = vmatpush.bf16.msra.mxu0 %v762
        %778 = vmatpush.bf16.msra.mxu0 %v761
        %779 = vmatpush.bf16.msra.mxu0 %v760
        %780 = vmatpush.bf16.msra.mxu0 %v759
        %781 = vmatpush.bf16.msra.mxu0 %v758
        %782 = vmatmul.bf16.gmra.mxu0 %v708
        %v783 = vpop.f32.mrf.mxu0
        %v784 = vadd.f32 0.0, %v783
        %v785 = vpop.f32.mrf.mxu0
        %v786 = vadd.f32 0.0, %v785
        %787 = vdwg.mxu0
        %v788 = vadd.f32 %v702, %v784
        %v789 = vadd.f32 %v704, %v786
        %v790 = vld [vmem:[%s4] sm:$0x1]
        %v792 = vperm.slane %v790, 0
        %v794 = vadd.f32 %v788, %v792
        %v795 = vadd.f32 %v789, %v792
        %v796 = vadd.f32 %v794, %v282
        %v797 = vadd.f32 %v795, %v283
        %v798 = vmax.f32 %v796, 0.0
        %v799 = vmax.f32 %v797, 0.0
        %800 = vst [vmem:[%s277] sm:$0xff] %v798
        %801 = vst [vmem:[%s277 + $0x8] sm:$0xff] %v799
        %s802 = sand.u32 %s141, 1
        %s803 = scalar_lea.sflag [#allocation5], %s802
        %s804 = sand.u32 %s141, 1
        %s805 = smul.addr %s804, 16
        %s806 = scalar_lea.vmem [#allocation9], %s805
        // Predicated region
        $region53: #{tpu_custom_call.1} parent=39 // pred_check
          %p807 = pneg %p151
        $region54: #{tpu_custom_call.1} parent=39 // pred_check_branch
          %809 = sbr.rel (%p807) target = $region56
        $region55: #{tpu_custom_call.1} parent=39 // pred_region
          %811 = vsyncadd %s803, 0
          %s812 = smul.addr %s23, 2
          %s813 = smul.addr %s812, 8
          %s814 = scalar_lea.hbm %s5, %s813
          %s815 = sshll.u32 %s806, 4
          %s816 = int_to_ptr.vmem [resolvable:$true] %s815
          %s817 = sshll.u32 %s814, 4
          %s818 = int_to_ptr.hbm [resolvable:$true] %s817
          %823 = dma.vmem_to_hbm [thread:$0]  %s816, 256, %s818, %s803, 128, 128, 8
        $region56: #{tpu_custom_call.1} parent=39 // pred_fallthru
          _
      $region40: #{tpu_custom_call.1} parent=5 // pred_fallthru
        _
      %p824 = scmp.le.s32.totalorder 2, %s18
      // Predicated region
      $region57: #{tpu_custom_call.1} parent=5 // pred_check
        %p825 = pneg %p824
      $region58: #{tpu_custom_call.1} parent=5 // pred_check_branch
        %827 = sbr.rel (%p825) target = $region60
      $region59: #{tpu_custom_call.1} parent=5 // pred_region
        %s828 = ssub.s32 %s18, 2
        // Predicated region
        $region61: #{tpu_custom_call.1} parent=59 // pred_check
          %p829 = pneg %p157
        $region62: #{tpu_custom_call.1} parent=59 // pred_check_branch
          %831 = sbr.rel (%p829) target = $region64
        $region63: #{tpu_custom_call.1} parent=59 // pred_region
          %s832 = sand.u32 %s142, 1
          %s833 = scalar_lea.sflag [#allocation5], %s832
          %s834 = sand.u32 %s142, 1
          %s835 = smul.addr %s834, 16
          %s836 = scalar_lea.vmem [#allocation9], %s835
          %838 = dma.done %s833, 256
        $region64: #{tpu_custom_call.1} parent=59 // pred_fallthru
          _
      $region60: #{tpu_custom_call.1} parent=5 // pred_fallthru
        _
    $region6: #{tpu_custom_call.1} parent=1 // loop_footer
      %s22 = sadd.s32 1, %s18
    $region7: #{tpu_custom_call.1} parent=1 // loop_footer_branch
      %17 = sbr.rel target = $region3
    $region8: #{tpu_custom_call.1} parent=1 // loop_exit
      _
    %839 = vsyncpa [#allocation4], 1
    %s840 = scalar_lea.sflag [#allocation4], 1
    %841 = vsyncpa %s840, 1
    %842 = vsyncpa [#allocation7], 1
    %843 = vsyncpa [#allocation5], 1
    %s844 = scalar_lea.sflag [#allocation5], 1
    %845 = vsyncpa %s844, 1

</llo_original>
